<compile_context>
chip_gen: v6e
topology: v6e:2x2x1
jax: 0.10.0
libtpu: 0.0.40
codegen_flags: <defaults>
</compile_context>

<pallas_src>
import math

import jax
import jax.numpy as jnp
import numpy as np
from jax.experimental import pallas as pl
from jax.experimental.pallas import tpu as pltpu

N_QUBITS = 2
DIM = 1 << N_QUBITS            # 4 basis states |q0 q1>, wire 0 = MSB
LANE = 128                     # TPU lane width
DEFAULT_TILE_BATCH = 1024      # samples per grid step (multiple of 128)


# ----------------------------------------------------------------------------
# Pallas kernel: one lane-dense batch tile of 2-qubit statevector simulation
# ----------------------------------------------------------------------------
def qlayer_kernel(ur_ref, ui_ref, x_ref, out_ref):
    """x_ref: (2, TB) RX angles.  out_ref: (2, TB) = (<Z0>, <Z1>) per sample.

    ur_ref / ui_ref: (16,) f32 in SMEM = real/imag of the fixed 4x4 unitary U
    (row-major).  The 4-wide contraction is unrolled as scalar * vector MACs
    on the VPU (K=4 is far too small for the MXU).
    """
    x = x_ref[...].astype(jnp.float32)           # single up-cast, f32 math
    half = x * 0.5
    c = jnp.cos(half)                            # (2, TB)
    s = jnp.sin(half)
    c0, c1 = c[0:1, :], c[1:2, :]                # (1, TB) each
    s0, s1 = s[0:1, :], s[1:2, :]

    # RX angle embedding: psi = RX(x0)|0> (x) RX(x1)|0>
    #   real(psi) = [cc, 0, 0, -ss],  imag(psi) = [0, -cs, -sc, 0]
    cc = c0 * c1
    cs = c0 * s1
    sc = s0 * c1
    ss = s0 * s1

    # final_k = sum_j U[k, j] * psi_j  (complex);  probs_k = |final_k|^2
    probs = []
    for k in range(DIM):
        ur0 = ur_ref[4 * k + 0]
        ur1 = ur_ref[4 * k + 1]
        ur2 = ur_ref[4 * k + 2]
        ur3 = ur_ref[4 * k + 3]
        ui0 = ui_ref[4 * k + 0]
        ui1 = ui_ref[4 * k + 1]
        ui2 = ui_ref[4 * k + 2]
        ui3 = ui_ref[4 * k + 3]
        re = ur0 * cc + ui1 * cs + ui2 * sc - ur3 * ss
        im = ui0 * cc - ur1 * cs - ur2 * sc - ui3 * ss
        probs.append(re * re + im * im)           # (1, TB)

    p00, p01, p10, p11 = probs
    z0 = (p00 + p01) - (p10 + p11)                # <Z_0>: +,+,-,-
    z1 = (p00 + p10) - (p01 + p11)                # <Z_1>: +,-,+,-

    out = jnp.concatenate([z0, z1], axis=0)       # (2, TB)
    out_ref[...] = out.astype(out_ref.dtype)      # single down-cast at store


# ----------------------------------------------------------------------------
# Glue: fixed-gate unitary construction (plain numpy, not in the hot path)
# ----------------------------------------------------------------------------
def _rz(theta):
    return np.array([[np.exp(-0.5j * theta), 0.0],
                     [0.0, np.exp(0.5j * theta)]], dtype=np.complex128)


def _ry(theta):
    ct, st = np.cos(theta / 2.0), np.sin(theta / 2.0)
    return np.array([[ct, -st], [st, ct]], dtype=np.complex128)


def _rot(phi, theta, omega):
    # PennyLane Rot(phi, theta, omega) = RZ(omega) RY(theta) RZ(phi)
    return _rz(omega) @ _ry(theta) @ _rz(phi)


def build_fixed_unitary(weights_0, weight_1):
    """CNOT(0->1) @ (Rot(weights_0) on wire 0  (x)  RY(weight_1) on wire 1)."""
    w0 = np.asarray(weights_0, dtype=np.float64)
    w1 = float(weight_1)
    single = np.kron(_rot(w0[0], w0[1], w0[2]), _ry(w1))        # wire 0 is MSB
    cnot = np.array([[1, 0, 0, 0],
                     [0, 1, 0, 0],
                     [0, 0, 0, 1],
                     [0, 0, 1, 0]], dtype=np.complex128)
    return (cnot @ single).astype(np.complex64)                 # (4, 4)


def _round_up(n, m):
    return ((n + m - 1) // m) * m


def torch_layer_forward(inputs, weights_0, weight_1,
                        tile_batch=DEFAULT_TILE_BATCH):
    """Pallas-backed equivalent of TorchLayer.forward(inputs).

    inputs: (B, 2) angles.  Returns (B, 2) = (<Z0>, <Z1>) per sample.
    """
    B = inputs.shape[0]
    u = build_fixed_unitary(weights_0, weight_1)
    ur = jnp.asarray(np.real(u).reshape(-1), dtype=jnp.float32)   # (16,) SMEM
    ui = jnp.asarray(np.imag(u).reshape(-1), dtype=jnp.float32)   # (16,) SMEM

    # Lane-dense working layout: batch on the lane axis, padded to the tile.
    TB = min(int(tile_batch), _round_up(B, LANE))
    num_tiles = pl.cdiv(B, TB)
    Bp = num_tiles * TB

    x2b = jnp.transpose(inputs)                                   # (2, B)
    if Bp != B:
        x2b = jnp.pad(x2b, ((0, 0), (0, Bp - B)))                 # (2, Bp)

    cost = pl.CostEstimate(flops=96 * Bp,
                           transcendentals=4 * Bp,
                           bytes_accessed=16 * Bp)

    out2b = pl.pallas_call(
        qlayer_kernel,
        out_shape=jax.ShapeDtypeStruct((2, Bp), inputs.dtype),
        grid=(num_tiles,),
        in_specs=[
            pl.BlockSpec(memory_space=pltpu.MemorySpace.SMEM),    # ur (16,)
            pl.BlockSpec(memory_space=pltpu.MemorySpace.SMEM),    # ui (16,)
            pl.BlockSpec((2, TB), lambda i: (0, i)),              # x  (2, TB)
        ],
        out_specs=pl.BlockSpec((2, TB), lambda i: (0, i)),        # out (2, TB)
        compiler_params=pltpu.CompilerParams(
            dimension_semantics=("parallel",)),
        cost_estimate=cost,
    )(ur, ui, x2b)

    return jnp.transpose(out2b)[:B, :]                            # (B, 2)


# ----------------------------------------------------------------------------
# Pure-numpy reference (statevector simulation) for correctness check
# ----------------------------------------------------------------------------
def reference_forward(inputs, weights_0, weight_1):
    x = np.asarray(inputs, dtype=np.float64)
    c, s = np.cos(x / 2.0), np.sin(x / 2.0)
    psi = np.stack(
        [c[:, 0] * c[:, 1],
         -1j * c[:, 0] * s[:, 1],
         -1j * s[:, 0] * c[:, 1],
         -s[:, 0] * s[:, 1]], axis=1)                             # (B, 4)
    u = build_fixed_unitary(weights_0, weight_1).astype(np.complex128)
    f = psi @ u.T                                                 # (B, 4)
    probs = np.abs(f) ** 2
    z = np.array([[1, 1], [1, -1], [-1, 1], [-1, -1]], dtype=np.float64)
    return (probs @ z).astype(np.float32)


if __name__ == "__main__":
    key = jax.random.PRNGKey(0)
    k_x, k_w0, k_w1 = jax.random.split(key, 3)

    batch = 8
    # inputs: (batch, n_qubits=2), like the docstring hybrid model
    x = jax.random.uniform(k_x, (batch, N_QUBITS), dtype=jnp.float32,
                           minval=-math.pi, maxval=math.pi)

    # TorchLayer default init: uniform over [0, 2*pi]
    # weight_shapes = {"weights_0": 3 -> shape (3,), "weight_1": 1 -> scalar}
    weights_0 = jax.random.uniform(k_w0, (3,), dtype=jnp.float32,
                                   minval=0.0, maxval=2.0 * math.pi)
    weight_1 = jax.random.uniform(k_w1, (), dtype=jnp.float32,
                                  minval=0.0, maxval=2.0 * math.pi)

    out = torch_layer_forward(x, np.asarray(weights_0), float(weight_1))
    out = jax.block_until_ready(out)

    ref = reference_forward(np.asarray(x), np.asarray(weights_0),
                            float(weight_1))
    np.testing.assert_allclose(np.asarray(out), ref, rtol=1e-4, atol=1e-5)

    # TODO(synk): TorchLayer is generic over arbitrary QNodes; only the
    # docstring 2-qubit example circuit is instantiated and simulated here.
    print("KERNEL_OK")
</pallas_src>

<mosaic_0001>
module attributes {stable_mosaic.version = 11 : i64} {
  func.func @qlayer_kernel(%arg0: i32, %arg1: memref<16xf32, #tpu.memory_space<smem>>, %arg2: memref<16xf32, #tpu.memory_space<smem>>, %arg3: memref<2x128xf32, #tpu.memory_space<vmem>>, %arg4: memref<2x128xf32, #tpu.memory_space<vmem>>) attributes {dimension_semantics = [#tpu.dimension_semantics<parallel>], iteration_bounds = array<i64: 1>, scalar_prefetch = 0 : i64, scratch_operands = 0 : i64, tpu.core_type = #tpu.core_type<tc>, window_params = [{transform_indices = @transform_0, window_bounds = array<i64: 16>}, {transform_indices = @transform_1, window_bounds = array<i64: 16>}, {transform_indices = @transform_2, window_bounds = array<i64: 2, 128>}, {transform_indices = @transform_3, window_bounds = array<i64: 2, 128>}]} {
    %c0 = arith.constant 0 : index
    %c0_0 = arith.constant 0 : index
    %0 = vector.load %arg3[%c0, %c0_0] : memref<2x128xf32, #tpu.memory_space<vmem>>, vector<2x128xf32>
    %cst = arith.constant 5.000000e-01 : f32
    %1 = vector.broadcast %cst : f32 to vector<2x128xf32>
    %2 = arith.mulf %0, %1 : vector<2x128xf32>
    %3 = math.cos %2 : vector<2x128xf32>
    %4 = math.sin %2 : vector<2x128xf32>
    %5 = vector.extract_strided_slice %3 {offsets = [0, 0], sizes = [1, 128], strides = [1, 1]} : vector<2x128xf32> to vector<1x128xf32>
    %6 = vector.extract_strided_slice %3 {offsets = [1, 0], sizes = [1, 128], strides = [1, 1]} : vector<2x128xf32> to vector<1x128xf32>
    %7 = vector.extract_strided_slice %4 {offsets = [0, 0], sizes = [1, 128], strides = [1, 1]} : vector<2x128xf32> to vector<1x128xf32>
    %8 = vector.extract_strided_slice %4 {offsets = [1, 0], sizes = [1, 128], strides = [1, 1]} : vector<2x128xf32> to vector<1x128xf32>
    %9 = arith.mulf %5, %6 : vector<1x128xf32>
    %10 = arith.mulf %5, %8 : vector<1x128xf32>
    %11 = arith.mulf %7, %6 : vector<1x128xf32>
    %12 = arith.mulf %7, %8 : vector<1x128xf32>
    %c0_1 = arith.constant 0 : index
    %13 = memref.load %arg1[%c0_1] : memref<16xf32, #tpu.memory_space<smem>>
    %c1 = arith.constant 1 : index
    %14 = memref.load %arg1[%c1] : memref<16xf32, #tpu.memory_space<smem>>
    %c2 = arith.constant 2 : index
    %15 = memref.load %arg1[%c2] : memref<16xf32, #tpu.memory_space<smem>>
    %c3 = arith.constant 3 : index
    %16 = memref.load %arg1[%c3] : memref<16xf32, #tpu.memory_space<smem>>
    %c0_2 = arith.constant 0 : index
    %17 = memref.load %arg2[%c0_2] : memref<16xf32, #tpu.memory_space<smem>>
    %c1_3 = arith.constant 1 : index
    %18 = memref.load %arg2[%c1_3] : memref<16xf32, #tpu.memory_space<smem>>
    %c2_4 = arith.constant 2 : index
    %19 = memref.load %arg2[%c2_4] : memref<16xf32, #tpu.memory_space<smem>>
    %c3_5 = arith.constant 3 : index
    %20 = memref.load %arg2[%c3_5] : memref<16xf32, #tpu.memory_space<smem>>
    %21 = vector.broadcast %13 : f32 to vector<1x128xf32>
    %22 = arith.mulf %21, %9 : vector<1x128xf32>
    %23 = vector.broadcast %18 : f32 to vector<1x128xf32>
    %24 = arith.mulf %23, %10 : vector<1x128xf32>
    %25 = arith.addf %22, %24 : vector<1x128xf32>
    %26 = vector.broadcast %19 : f32 to vector<1x128xf32>
    %27 = arith.mulf %26, %11 : vector<1x128xf32>
    %28 = arith.addf %25, %27 : vector<1x128xf32>
    %29 = vector.broadcast %16 : f32 to vector<1x128xf32>
    %30 = arith.mulf %29, %12 : vector<1x128xf32>
    %31 = arith.subf %28, %30 : vector<1x128xf32>
    %32 = vector.broadcast %17 : f32 to vector<1x128xf32>
    %33 = arith.mulf %32, %9 : vector<1x128xf32>
    %34 = vector.broadcast %14 : f32 to vector<1x128xf32>
    %35 = arith.mulf %34, %10 : vector<1x128xf32>
    %36 = arith.subf %33, %35 : vector<1x128xf32>
    %37 = vector.broadcast %15 : f32 to vector<1x128xf32>
    %38 = arith.mulf %37, %11 : vector<1x128xf32>
    %39 = arith.subf %36, %38 : vector<1x128xf32>
    %40 = vector.broadcast %20 : f32 to vector<1x128xf32>
    %41 = arith.mulf %40, %12 : vector<1x128xf32>
    %42 = arith.subf %39, %41 : vector<1x128xf32>
    %43 = arith.mulf %31, %31 : vector<1x128xf32>
    %44 = arith.mulf %42, %42 : vector<1x128xf32>
    %45 = arith.addf %43, %44 : vector<1x128xf32>
    %c4 = arith.constant 4 : index
    %46 = memref.load %arg1[%c4] : memref<16xf32, #tpu.memory_space<smem>>
    %c5 = arith.constant 5 : index
    %47 = memref.load %arg1[%c5] : memref<16xf32, #tpu.memory_space<smem>>
    %c6 = arith.constant 6 : index
    %48 = memref.load %arg1[%c6] : memref<16xf32, #tpu.memory_space<smem>>
    %c7 = arith.constant 7 : index
    %49 = memref.load %arg1[%c7] : memref<16xf32, #tpu.memory_space<smem>>
    %c4_6 = arith.constant 4 : index
    %50 = memref.load %arg2[%c4_6] : memref<16xf32, #tpu.memory_space<smem>>
    %c5_7 = arith.constant 5 : index
    %51 = memref.load %arg2[%c5_7] : memref<16xf32, #tpu.memory_space<smem>>
    %c6_8 = arith.constant 6 : index
    %52 = memref.load %arg2[%c6_8] : memref<16xf32, #tpu.memory_space<smem>>
    %c7_9 = arith.constant 7 : index
    %53 = memref.load %arg2[%c7_9] : memref<16xf32, #tpu.memory_space<smem>>
    %54 = vector.broadcast %46 : f32 to vector<1x128xf32>
    %55 = arith.mulf %54, %9 : vector<1x128xf32>
    %56 = vector.broadcast %51 : f32 to vector<1x128xf32>
    %57 = arith.mulf %56, %10 : vector<1x128xf32>
    %58 = arith.addf %55, %57 : vector<1x128xf32>
    %59 = vector.broadcast %52 : f32 to vector<1x128xf32>
    %60 = arith.mulf %59, %11 : vector<1x128xf32>
    %61 = arith.addf %58, %60 : vector<1x128xf32>
    %62 = vector.broadcast %49 : f32 to vector<1x128xf32>
    %63 = arith.mulf %62, %12 : vector<1x128xf32>
    %64 = arith.subf %61, %63 : vector<1x128xf32>
    %65 = vector.broadcast %50 : f32 to vector<1x128xf32>
    %66 = arith.mulf %65, %9 : vector<1x128xf32>
    %67 = vector.broadcast %47 : f32 to vector<1x128xf32>
    %68 = arith.mulf %67, %10 : vector<1x128xf32>
    %69 = arith.subf %66, %68 : vector<1x128xf32>
    %70 = vector.broadcast %48 : f32 to vector<1x128xf32>
    %71 = arith.mulf %70, %11 : vector<1x128xf32>
    %72 = arith.subf %69, %71 : vector<1x128xf32>
    %73 = vector.broadcast %53 : f32 to vector<1x128xf32>
    %74 = arith.mulf %73, %12 : vector<1x128xf32>
    %75 = arith.subf %72, %74 : vector<1x128xf32>
    %76 = arith.mulf %64, %64 : vector<1x128xf32>
    %77 = arith.mulf %75, %75 : vector<1x128xf32>
    %78 = arith.addf %76, %77 : vector<1x128xf32>
    %c8 = arith.constant 8 : index
    %79 = memref.load %arg1[%c8] : memref<16xf32, #tpu.memory_space<smem>>
    %c9 = arith.constant 9 : index
    %80 = memref.load %arg1[%c9] : memref<16xf32, #tpu.memory_space<smem>>
    %c10 = arith.constant 10 : index
    %81 = memref.load %arg1[%c10] : memref<16xf32, #tpu.memory_space<smem>>
    %c11 = arith.constant 11 : index
    %82 = memref.load %arg1[%c11] : memref<16xf32, #tpu.memory_space<smem>>
    %c8_10 = arith.constant 8 : index
    %83 = memref.load %arg2[%c8_10] : memref<16xf32, #tpu.memory_space<smem>>
    %c9_11 = arith.constant 9 : index
    %84 = memref.load %arg2[%c9_11] : memref<16xf32, #tpu.memory_space<smem>>
    %c10_12 = arith.constant 10 : index
    %85 = memref.load %arg2[%c10_12] : memref<16xf32, #tpu.memory_space<smem>>
    %c11_13 = arith.constant 11 : index
    %86 = memref.load %arg2[%c11_13] : memref<16xf32, #tpu.memory_space<smem>>
    %87 = vector.broadcast %79 : f32 to vector<1x128xf32>
    %88 = arith.mulf %87, %9 : vector<1x128xf32>
    %89 = vector.broadcast %84 : f32 to vector<1x128xf32>
    %90 = arith.mulf %89, %10 : vector<1x128xf32>
    %91 = arith.addf %88, %90 : vector<1x128xf32>
    %92 = vector.broadcast %85 : f32 to vector<1x128xf32>
    %93 = arith.mulf %92, %11 : vector<1x128xf32>
    %94 = arith.addf %91, %93 : vector<1x128xf32>
    %95 = vector.broadcast %82 : f32 to vector<1x128xf32>
    %96 = arith.mulf %95, %12 : vector<1x128xf32>
    %97 = arith.subf %94, %96 : vector<1x128xf32>
    %98 = vector.broadcast %83 : f32 to vector<1x128xf32>
    %99 = arith.mulf %98, %9 : vector<1x128xf32>
    %100 = vector.broadcast %80 : f32 to vector<1x128xf32>
    %101 = arith.mulf %100, %10 : vector<1x128xf32>
    %102 = arith.subf %99, %101 : vector<1x128xf32>
    %103 = vector.broadcast %81 : f32 to vector<1x128xf32>
    %104 = arith.mulf %103, %11 : vector<1x128xf32>
    %105 = arith.subf %102, %104 : vector<1x128xf32>
    %106 = vector.broadcast %86 : f32 to vector<1x128xf32>
    %107 = arith.mulf %106, %12 : vector<1x128xf32>
    %108 = arith.subf %105, %107 : vector<1x128xf32>
    %109 = arith.mulf %97, %97 : vector<1x128xf32>
    %110 = arith.mulf %108, %108 : vector<1x128xf32>
    %111 = arith.addf %109, %110 : vector<1x128xf32>
    %c12 = arith.constant 12 : index
    %112 = memref.load %arg1[%c12] : memref<16xf32, #tpu.memory_space<smem>>
    %c13 = arith.constant 13 : index
    %113 = memref.load %arg1[%c13] : memref<16xf32, #tpu.memory_space<smem>>
    %c14 = arith.constant 14 : index
    %114 = memref.load %arg1[%c14] : memref<16xf32, #tpu.memory_space<smem>>
    %c15 = arith.constant 15 : index
    %115 = memref.load %arg1[%c15] : memref<16xf32, #tpu.memory_space<smem>>
    %c12_14 = arith.constant 12 : index
    %116 = memref.load %arg2[%c12_14] : memref<16xf32, #tpu.memory_space<smem>>
    %c13_15 = arith.constant 13 : index
    %117 = memref.load %arg2[%c13_15] : memref<16xf32, #tpu.memory_space<smem>>
    %c14_16 = arith.constant 14 : index
    %118 = memref.load %arg2[%c14_16] : memref<16xf32, #tpu.memory_space<smem>>
    %c15_17 = arith.constant 15 : index
    %119 = memref.load %arg2[%c15_17] : memref<16xf32, #tpu.memory_space<smem>>
    %120 = vector.broadcast %112 : f32 to vector<1x128xf32>
    %121 = arith.mulf %120, %9 : vector<1x128xf32>
    %122 = vector.broadcast %117 : f32 to vector<1x128xf32>
    %123 = arith.mulf %122, %10 : vector<1x128xf32>
    %124 = arith.addf %121, %123 : vector<1x128xf32>
    %125 = vector.broadcast %118 : f32 to vector<1x128xf32>
    %126 = arith.mulf %125, %11 : vector<1x128xf32>
    %127 = arith.addf %124, %126 : vector<1x128xf32>
    %128 = vector.broadcast %115 : f32 to vector<1x128xf32>
    %129 = arith.mulf %128, %12 : vector<1x128xf32>
    %130 = arith.subf %127, %129 : vector<1x128xf32>
    %131 = vector.broadcast %116 : f32 to vector<1x128xf32>
    %132 = arith.mulf %131, %9 : vector<1x128xf32>
    %133 = vector.broadcast %113 : f32 to vector<1x128xf32>
    %134 = arith.mulf %133, %10 : vector<1x128xf32>
    %135 = arith.subf %132, %134 : vector<1x128xf32>
    %136 = vector.broadcast %114 : f32 to vector<1x128xf32>
    %137 = arith.mulf %136, %11 : vector<1x128xf32>
    %138 = arith.subf %135, %137 : vector<1x128xf32>
    %139 = vector.broadcast %119 : f32 to vector<1x128xf32>
    %140 = arith.mulf %139, %12 : vector<1x128xf32>
    %141 = arith.subf %138, %140 : vector<1x128xf32>
    %142 = arith.mulf %130, %130 : vector<1x128xf32>
    %143 = arith.mulf %141, %141 : vector<1x128xf32>
    %144 = arith.addf %142, %143 : vector<1x128xf32>
    %145 = arith.addf %45, %78 : vector<1x128xf32>
    %146 = arith.addf %111, %144 : vector<1x128xf32>
    %147 = arith.subf %145, %146 : vector<1x128xf32>
    %148 = arith.addf %45, %111 : vector<1x128xf32>
    %149 = arith.addf %78, %144 : vector<1x128xf32>
    %150 = arith.subf %148, %149 : vector<1x128xf32>
    %151 = tpu.concatenate %147, %150 in 0 : vector<1x128xf32>, vector<1x128xf32> -> vector<2x128xf32>
    %c0_18 = arith.constant 0 : index
    %c0_19 = arith.constant 0 : index
    %152 = vector.load %arg4[%c0_18, %c0_19] : memref<2x128xf32, #tpu.memory_space<vmem>>, vector<2x128xf32>
    tpu.vector_store %arg4[%c0_18, %c0_19], %151 {strides = array<i32>} : memref<2x128xf32, #tpu.memory_space<vmem>>, vector<2x128xf32>,
    return
  }
  func.func @transform_0(%arg0: i32) -> i32 {
    %c0_i32 = arith.constant 0 : i32
    %c0_i32_0 = arith.constant 0 : i32
    return %c0_i32 : i32
  }
  func.func @transform_1(%arg0: i32) -> i32 {
    %c0_i32 = arith.constant 0 : i32
    %c0_i32_0 = arith.constant 0 : i32
    return %c0_i32 : i32
  }
  func.func @transform_2(%arg0: i32) -> (i32, i32) {
    %c0_i32 = arith.constant 0 : i32
    %c0_i32_0 = arith.constant 0 : i32
    return %c0_i32, %arg0 : i32, i32
  }
  func.func @transform_3(%arg0: i32) -> (i32, i32) {
    %c0_i32 = arith.constant 0 : i32
    %c0_i32_0 = arith.constant 0 : i32
    return %c0_i32, %arg0 : i32, i32
  }
}

</mosaic_0001>

<llo_original>
// kernel: tpu_custom_call.1
$region0: #{tpu_custom_call.1}
  #allocation0 [shape = 'u32[]', space=smem, size = 0x4, offset = 0x4, fixed_abs, tag = 'smem constant byte address 0x4 - core index']
  #allocation1 [shape = 'u32[144,128]{1,0:T(1,128)}', space=vmem, size = 0x12000, scoped, tag = 'internal scratch']
  %s0 = inlined_call_operand.hbm [shape: f32[16], index: 0, kind: input, shape index: {}]
  %s1 = inlined_call_operand.vmem [shape: f32[16], index: 1, kind: input, shape index: {}]
  %s2 = inlined_call_operand.vmem [shape: f32[2,128], index: 2, kind: input, shape index: {}]
  %s3 = inlined_call_operand.hbm [shape: f32[2,128], index: 3, kind: output, shape index: {}]
  %s4 = sld [smem:[#allocation0]]
  $region30: #{tpu_custom_call.1} parent=0
    _
  %s6 = ssub.s32 1, %s4
  %s7 = scalar_select 0, %s6, %s4
  $region1: #{tpu_custom_call.1} parent=0
    #allocation2 [shape = 'u8[512]{0}', space=smem, size = 0x200, scoped, tag = 'input window, operand 0, single buffered']
    #allocation3 [shape = 's32[1]{0}', space=sflag, size = 0x4, scoped, tag = 'scoped memory for tpu_custom_call.1']
    #allocation4 [shape = 's32[1]{0}', space=sflag, size = 0x4, scoped, tag = 'scoped memory for tpu_custom_call.1']
    #allocation5 [shape = 's32[1]{0}', space=sflag, size = 0x4, scoped, tag = 'scoped memory for tpu_custom_call.1']
    #allocation6 [shape = 'u8[512]{0}', space=smem, size = 0x200, scoped, tag = 'input window, operand 1, single buffered']
    #allocation7 [shape = 'u8[1024]{0}', space=vmem, size = 0x400, scoped, tag = 'output window, operand 0, single buffered']
    %8 = vsyncpa [#allocation4], 0
    %9 = vsyncpa [#allocation5], 0
    %10 = vsyncpa [#allocation3], 0
    // Predicated region
    $region2: #{tpu_custom_call.1} parent=1 // pred_check
      _
    $region3: #{tpu_custom_call.1} parent=1 // pred_check_branch
      %12 = sbr.rel (0) target = $region5
    $region4: #{tpu_custom_call.1} parent=1 // pred_region
      %s14 = ssub.s32 16, 16
      %15 = vsyncadd [#allocation4], %s14
      %18 = dma.hbm_to_smem %s0, 16, [#allocation2], [#allocation4]
    $region5: #{tpu_custom_call.1} parent=1 // pred_fallthru
      _
    // Predicated region
    $region6: #{tpu_custom_call.1} parent=1 // pred_check
      _
    $region7: #{tpu_custom_call.1} parent=1 // pred_check_branch
      %20 = sbr.rel (0) target = $region9
    $region8: #{tpu_custom_call.1} parent=1 // pred_region
      %s22 = ssub.s32 16, 16
      %23 = vsyncadd [#allocation5], %s22
      %s25 = sshll.u32 %s1, 4
      %s26 = int_to_ptr.vmem [resolvable:$true] %s25
      %28 = dma.vmem_to_smem %s26, 16, [#allocation6], [#allocation5]
    $region9: #{tpu_custom_call.1} parent=1 // pred_fallthru
      _
    // Predicated region
    $region10: #{tpu_custom_call.1} parent=1 // pred_check
      _
    $region11: #{tpu_custom_call.1} parent=1 // pred_check_branch
      %30 = sbr.rel (0) target = $region13
    $region12: #{tpu_custom_call.1} parent=1 // pred_region
      _
    $region13: #{tpu_custom_call.1} parent=1 // pred_fallthru
      _
    // Predicated region
    $region14: #{tpu_custom_call.1} parent=1 // pred_check
      _
    $region15: #{tpu_custom_call.1} parent=1 // pred_check_branch
      %32 = sbr.rel (0) target = $region17
    $region16: #{tpu_custom_call.1} parent=1 // pred_region
      %33 = dma.done [#allocation4], 16
    $region17: #{tpu_custom_call.1} parent=1 // pred_fallthru
      _
    // Predicated region
    $region18: #{tpu_custom_call.1} parent=1 // pred_check
      _
    $region19: #{tpu_custom_call.1} parent=1 // pred_check_branch
      %35 = sbr.rel (0) target = $region21
    $region20: #{tpu_custom_call.1} parent=1 // pred_region
      %36 = dma.done [#allocation5], 16
    $region21: #{tpu_custom_call.1} parent=1 // pred_fallthru
      _
    %37 = sfence
    %v38 = vld [vmem:[%s2] sm:$0x3]
    %v39 = vmul.f32 %v38, 0.5
    %v40 = vand.u32 2147483647, %v39
    %vm41 = vcmp.le.f32.partialorder %v40, 0.7853982
    %vm42 = vcmp.lt.s32.totalorder %v39, 0
    %v43 = vand.u32 %v39, 2139095040
    %v44 = vshrl.u32 %v43, 23
    %v45 = vsub.s32 %v44, 127
    %v46 = vand.u32 2147483647, %v39
    %v47 = vand.u32 %v46, 8388607
    %v48 = vor.u32 %v47, 8388608
    %v49 = vsub.s32 0, %v48
    %v50 = vadd.s32 %v45, 1
    %vm51 = vcmp.gt.s32.totalorder %v50, 0
    %v52 = vsel %vm51, %v50, 0
    %v53 = vshrl.u32 %v52, 5
    %v54 = vand.u32 %v52, 31
    %v55 = vsub.s32 32, %v54
    %v56 = vshrl.u32 683565275, %v55
    %v57 = vshll.u32 683565275, %v54
    %v58 = vshrl.u32 2475754826, %v55
    %v59 = vor.u32 %v57, %v58
    %v60 = vshll.u32 2475754826, %v54
    %v61 = vshrl.u32 2131351028, %v55
    %v62 = vor.u32 %v60, %v61
    %v63 = vshll.u32 2131351028, %v54
    %v64 = vshrl.u32 2102212464, %v55
    %v65 = vor.u32 %v63, %v64
    %v66 = vshll.u32 2102212464, %v54
    %v67 = vshrl.u32 920167782, %v55
    %v68 = vor.u32 %v66, %v67
    %v69 = vshll.u32 920167782, %v54
    %v70 = vshrl.u32 1326507024, %v55
    %v71 = vor.u32 %v69, %v70
    %vm72 = vcmp.lt.s32.totalorder %v53, 1
    %vm73 = vcmp.lt.s32.totalorder %v53, 2
    %vm74 = vcmp.lt.s32.totalorder %v53, 3
    %vm75 = vcmp.lt.s32.totalorder %v53, 4
    %v76 = vsel %vm72, %v56, %v59
    %v77 = vsel %vm75, %v65, 2102212464
    %v78 = vsel %vm74, %v62, %v77
    %v79 = vsel %vm73, %v76, %v78
    %v80 = vsel %vm72, %v59, %v62
    %v81 = vsel %vm75, %v68, 920167782
    %v82 = vsel %vm74, %v65, %v81
    %v83 = vsel %vm73, %v80, %v82
    %v84 = vsel %vm72, %v62, %v65
    %v85 = vsel %vm75, %v71, 1326507024
    %v86 = vsel %vm74, %v68, %v85
    %v87 = vsel %vm73, %v84, %v86
    %v88 = vshll.u32 %v48, 8
    %v89 = vmul.u32.u64.compose %v88, %v87
    %v90 = vextract.low.u32 %v89
    %v91 = vextract.high.u32 %v89
    %v92 = vmul.u32.u64.compose %v88, %v83
    %v93 = vextract.low.u32 %v92
    %v94 = vextract.high.u32 %v92
    %v95 = vmul.u32 %v88, %v79
    %v96 = vadd.s32 %v91, %v93
    %vm97 = vc.u32 %v91, %v93
    %v98 = vadd.s32 %v94, 1
    %v99 = vsel %vm97, %v98, %v94
    %v100 = vadd.s32 %v95, %v99
    %v101 = vadd.s32 %v100, 536870912
    %v102 = vshrl.u32 %v101, 30
    %v103 = vshll.u32 %v102, 30
    %v104 = vsub.s32 %v100, %v103
    %vm105 = vcmp.lt.s32.totalorder %v104, 0
    %v106 = vsub.s32 0, %v104
    %v107 = vsel %vm105, %v106, %v104
    %v108 = vclz %v107
    %v109 = vsub.s32 %v108, 2
    %vm110 = vcmp.gt.s32.totalorder 0, %v109
    %v111 = vsel %vm110, 0, %v109
    %v112 = vsub.s32 32, %v111
    %v113 = vshll.u32 %v104, %v111
    %v114 = vshrl.u32 %v96, %v112
    %v115 = vor.u32 %v113, %v114
    %v116 = vsub.s32 4294967266, %v111
    %v117 = vadd.s32 %v116, 127
    %v118 = vshll.u32 %v117, 23
    %v119 = vor.u32 4788187, %v118
    %v120 = vand.u32 2147483647, %v119
    %v122 = vcvt.s32.f32 %v115
    %v123 = vmul.f32 %v122, %v120
    %v124 = vxor.u32 %v123, 2147483648
    %v125 = vsel %vm42, %v124, %v123
    %v126 = vsub.s32 4, %v102
    %v127 = vsel %vm42, %v126, %v102
    %v128 = vsel %vm41, %v39, %v125
    %v129 = vsel %vm41, 0, %v127
    %v130 = vcosq.f32.pop %v128
    %v131 = vsinq.f32.pop %v128
    %vm132 = vweird.f32 %v39
    %v133 = vand.u32 %v129, 3
    %vm134 = vcmp.lt.s32.totalorder %v133, 2
    %vm135 = vcmp.eq.s32.totalorder %v133, 0
    %v136 = vxor.u32 %v131, 2147483648
    %v137 = vsel %vm135, %v130, %v136
    %vm138 = vcmp.eq.s32.totalorder %v133, 2
    %v139 = vxor.u32 %v130, 2147483648
    %v140 = vsel %vm138, %v139, %v131
    %v141 = vsel %vm134, %v137, %v140
    %v142 = vsel %vm132, nan, %v141
    %v143 = vand.u32 2147483647, %v39
    %vm144 = vcmp.le.f32.partialorder %v143, 0.7853982
    %vm145 = vcmp.lt.s32.totalorder %v39, 0
    %v146 = vand.u32 %v39, 2139095040
    %v147 = vshrl.u32 %v146, 23
    %v148 = vsub.s32 %v147, 127
    %v149 = vand.u32 2147483647, %v39
    %v150 = vand.u32 %v149, 8388607
    %v151 = vor.u32 %v150, 8388608
    %v152 = vsub.s32 0, %v151
    %v153 = vadd.s32 %v148, 1
    %vm154 = vcmp.gt.s32.totalorder %v153, 0
    %v155 = vsel %vm154, %v153, 0
    %v156 = vshrl.u32 %v155, 5
    %v157 = vand.u32 %v155, 31
    %v158 = vsub.s32 32, %v157
    %v159 = vshrl.u32 683565275, %v158
    %v160 = vshll.u32 683565275, %v157
    %v161 = vshrl.u32 2475754826, %v158
    %v162 = vor.u32 %v160, %v161
    %v163 = vshll.u32 2475754826, %v157
    %v164 = vshrl.u32 2131351028, %v158
    %v165 = vor.u32 %v163, %v164
    %v166 = vshll.u32 2131351028, %v157
    %v167 = vshrl.u32 2102212464, %v158
    %v168 = vor.u32 %v166, %v167
    %v169 = vshll.u32 2102212464, %v157
    %v170 = vshrl.u32 920167782, %v158
    %v171 = vor.u32 %v169, %v170
    %v172 = vshll.u32 920167782, %v157
    %v173 = vshrl.u32 1326507024, %v158
    %v174 = vor.u32 %v172, %v173
    %vm175 = vcmp.lt.s32.totalorder %v156, 1
    %vm176 = vcmp.lt.s32.totalorder %v156, 2
    %vm177 = vcmp.lt.s32.totalorder %v156, 3
    %vm178 = vcmp.lt.s32.totalorder %v156, 4
    %v179 = vsel %vm175, %v159, %v162
    %v180 = vsel %vm178, %v168, 2102212464
    %v181 = vsel %vm177, %v165, %v180
    %v182 = vsel %vm176, %v179, %v181
    %v183 = vsel %vm175, %v162, %v165
    %v184 = vsel %vm178, %v171, 920167782
    %v185 = vsel %vm177, %v168, %v184
    %v186 = vsel %vm176, %v183, %v185
    %v187 = vsel %vm175, %v165, %v168
    %v188 = vsel %vm178, %v174, 1326507024
    %v189 = vsel %vm177, %v171, %v188
    %v190 = vsel %vm176, %v187, %v189
    %v191 = vshll.u32 %v151, 8
    %v192 = vmul.u32.u64.compose %v191, %v190
    %v193 = vextract.low.u32 %v192
    %v194 = vextract.high.u32 %v192
    %v195 = vmul.u32.u64.compose %v191, %v186
    %v196 = vextract.low.u32 %v195
    %v197 = vextract.high.u32 %v195
    %v198 = vmul.u32 %v191, %v182
    %v199 = vadd.s32 %v194, %v196
    %vm200 = vc.u32 %v194, %v196
    %v201 = vadd.s32 %v197, 1
    %v202 = vsel %vm200, %v201, %v197
    %v203 = vadd.s32 %v198, %v202
    %v204 = vadd.s32 %v203, 536870912
    %v205 = vshrl.u32 %v204, 30
    %v206 = vshll.u32 %v205, 30
    %v207 = vsub.s32 %v203, %v206
    %vm208 = vcmp.lt.s32.totalorder %v207, 0
    %v209 = vsub.s32 0, %v207
    %v210 = vsel %vm208, %v209, %v207
    %v211 = vclz %v210
    %v212 = vsub.s32 %v211, 2
    %vm213 = vcmp.gt.s32.totalorder 0, %v212
    %v214 = vsel %vm213, 0, %v212
    %v215 = vsub.s32 32, %v214
    %v216 = vshll.u32 %v207, %v214
    %v217 = vshrl.u32 %v199, %v215
    %v218 = vor.u32 %v216, %v217
    %v219 = vsub.s32 4294967266, %v214
    %v220 = vadd.s32 %v219, 127
    %v221 = vshll.u32 %v220, 23
    %v222 = vor.u32 4788187, %v221
    %v223 = vand.u32 2147483647, %v222
    %v225 = vcvt.s32.f32 %v218
    %v226 = vmul.f32 %v225, %v223
    %v227 = vxor.u32 %v226, 2147483648
    %v228 = vsel %vm145, %v227, %v226
    %v229 = vsub.s32 4, %v205
    %v230 = vsel %vm145, %v229, %v205
    %v231 = vsel %vm144, %v39, %v228
    %v232 = vsel %vm144, 0, %v230
    %v233 = vcosq.f32.pop %v231
    %v234 = vsinq.f32.pop %v231
    %vm235 = vweird.f32 %v39
    %v236 = vadd.s32 %v232, 3
    %v237 = vand.u32 %v236, 3
    %vm238 = vcmp.lt.s32.totalorder %v237, 2
    %vm239 = vcmp.eq.s32.totalorder %v237, 0
    %v240 = vxor.u32 %v234, 2147483648
    %v241 = vsel %vm239, %v233, %v240
    %vm242 = vcmp.eq.s32.totalorder %v237, 2
    %v243 = vxor.u32 %v233, 2147483648
    %v244 = vsel %vm242, %v243, %v234
    %v245 = vsel %vm238, %v241, %v244
    %v246 = vsel %vm235, nan, %v245
    %v248 = vrot.slane %v142, 1
    %v250 = vmul.f32 %v142, %v248
    %v252 = vrot.slane %v246, 1
    %v254 = vmul.f32 %v142, %v252
    %v255 = vmul.f32 %v246, %v248
    %v256 = vmul.f32 %v246, %v252
    %s257 = sld [smem:[#allocation2]]
    %s258 = sld [smem:[#allocation2 + $0x1]]
    %s259 = sld [smem:[#allocation2 + $0x2]]
    %s260 = sld [smem:[#allocation2 + $0x3]]
    %s261 = sld [smem:[#allocation6]]
    %s262 = sld [smem:[#allocation6 + $0x1]]
    %s263 = sld [smem:[#allocation6 + $0x2]]
    %s264 = sld [smem:[#allocation6 + $0x3]]
    %v265 = vstv %s257
    %v266 = vmul.f32 %v265, %v250
    %v267 = vstv %s262
    %v268 = vmul.f32 %v267, %v254
    %v269 = vadd.f32 %v266, %v268
    %v270 = vstv %s263
    %v271 = vmul.f32 %v270, %v255
    %v272 = vadd.f32 %v269, %v271
    %v273 = vstv %s260
    %v274 = vmul.f32 %v273, %v256
    %v275 = vsub.f32 %v272, %v274
    %v276 = vstv %s261
    %v277 = vmul.f32 %v276, %v250
    %v278 = vstv %s258
    %v279 = vmul.f32 %v278, %v254
    %v280 = vsub.f32 %v277, %v279
    %v281 = vstv %s259
    %v282 = vmul.f32 %v281, %v255
    %v283 = vsub.f32 %v280, %v282
    %v284 = vstv %s264
    %v285 = vmul.f32 %v284, %v256
    %v286 = vsub.f32 %v283, %v285
    %v287 = vmul.f32 %v275, %v275
    %v288 = vmul.f32 %v286, %v286
    %v289 = vadd.f32 %v287, %v288
    %s290 = sld [smem:[#allocation2 + $0x4]]
    %s291 = sld [smem:[#allocation2 + $0x5]]
    %s292 = sld [smem:[#allocation2 + $0x6]]
    %s293 = sld [smem:[#allocation2 + $0x7]]
    %s294 = sld [smem:[#allocation6 + $0x4]]
    %s295 = sld [smem:[#allocation6 + $0x5]]
    %s296 = sld [smem:[#allocation6 + $0x6]]
    %s297 = sld [smem:[#allocation6 + $0x7]]
    %v298 = vstv %s290
    %v299 = vmul.f32 %v298, %v250
    %v300 = vstv %s295
    %v301 = vmul.f32 %v300, %v254
    %v302 = vadd.f32 %v299, %v301
    %v303 = vstv %s296
    %v304 = vmul.f32 %v303, %v255
    %v305 = vadd.f32 %v302, %v304
    %v306 = vstv %s293
    %v307 = vmul.f32 %v306, %v256
    %v308 = vsub.f32 %v305, %v307
    %v309 = vstv %s294
    %v310 = vmul.f32 %v309, %v250
    %v311 = vstv %s291
    %v312 = vmul.f32 %v311, %v254
    %v313 = vsub.f32 %v310, %v312
    %v314 = vstv %s292
    %v315 = vmul.f32 %v314, %v255
    %v316 = vsub.f32 %v313, %v315
    %v317 = vstv %s297
    %v318 = vmul.f32 %v317, %v256
    %v319 = vsub.f32 %v316, %v318
    %v320 = vmul.f32 %v308, %v308
    %v321 = vmul.f32 %v319, %v319
    %v322 = vadd.f32 %v320, %v321
    %s323 = sld [smem:[#allocation2 + $0x8]]
    %s324 = sld [smem:[#allocation2 + $0x9]]
    %s325 = sld [smem:[#allocation2 + $0xa]]
    %s326 = sld [smem:[#allocation2 + $0xb]]
    %s327 = sld [smem:[#allocation6 + $0x8]]
    %s328 = sld [smem:[#allocation6 + $0x9]]
    %s329 = sld [smem:[#allocation6 + $0xa]]
    %s330 = sld [smem:[#allocation6 + $0xb]]
    %v331 = vstv %s323
    %v332 = vmul.f32 %v331, %v250
    %v333 = vstv %s328
    %v334 = vmul.f32 %v333, %v254
    %v335 = vadd.f32 %v332, %v334
    %v336 = vstv %s329
    %v337 = vmul.f32 %v336, %v255
    %v338 = vadd.f32 %v335, %v337
    %v339 = vstv %s326
    %v340 = vmul.f32 %v339, %v256
    %v341 = vsub.f32 %v338, %v340
    %v342 = vstv %s327
    %v343 = vmul.f32 %v342, %v250
    %v344 = vstv %s324
    %v345 = vmul.f32 %v344, %v254
    %v346 = vsub.f32 %v343, %v345
    %v347 = vstv %s325
    %v348 = vmul.f32 %v347, %v255
    %v349 = vsub.f32 %v346, %v348
    %v350 = vstv %s330
    %v351 = vmul.f32 %v350, %v256
    %v352 = vsub.f32 %v349, %v351
    %v353 = vmul.f32 %v341, %v341
    %v354 = vmul.f32 %v352, %v352
    %v355 = vadd.f32 %v353, %v354
    %s356 = sld [smem:[#allocation2 + $0xc]]
    %s357 = sld [smem:[#allocation2 + $0xd]]
    %s358 = sld [smem:[#allocation2 + $0xe]]
    %s359 = sld [smem:[#allocation2 + $0xf]]
    %s360 = sld [smem:[#allocation6 + $0xc]]
    %s361 = sld [smem:[#allocation6 + $0xd]]
    %s362 = sld [smem:[#allocation6 + $0xe]]
    %s363 = sld [smem:[#allocation6 + $0xf]]
    %v364 = vstv %s356
    %v365 = vmul.f32 %v364, %v250
    %v366 = vstv %s361
    %v367 = vmul.f32 %v366, %v254
    %v368 = vadd.f32 %v365, %v367
    %v369 = vstv %s362
    %v370 = vmul.f32 %v369, %v255
    %v371 = vadd.f32 %v368, %v370
    %v372 = vstv %s359
    %v373 = vmul.f32 %v372, %v256
    %v374 = vsub.f32 %v371, %v373
    %v375 = vstv %s360
    %v376 = vmul.f32 %v375, %v250
    %v377 = vstv %s357
    %v378 = vmul.f32 %v377, %v254
    %v379 = vsub.f32 %v376, %v378
    %v380 = vstv %s358
    %v381 = vmul.f32 %v380, %v255
    %v382 = vsub.f32 %v379, %v381
    %v383 = vstv %s363
    %v384 = vmul.f32 %v383, %v256
    %v385 = vsub.f32 %v382, %v384
    %v386 = vmul.f32 %v374, %v374
    %v387 = vmul.f32 %v385, %v385
    %v388 = vadd.f32 %v386, %v387
    %v389 = vadd.f32 %v289, %v322
    %v390 = vadd.f32 %v355, %v388
    %v391 = vsub.f32 %v389, %v390
    %v392 = vadd.f32 %v289, %v355
    %v393 = vadd.f32 %v322, %v388
    %v394 = vsub.f32 %v392, %v393
    %v396 = vrot.slane %v394, 7
    %vm398 = vcmask 1040384
    %v399 = vsel %vm398, %v391, %v396
    %400 = vst [vmem:[#allocation7] sm:$0x3] %v399
    // Predicated region
    $region22: #{tpu_custom_call.1} parent=1 // pred_check
      _
    $region23: #{tpu_custom_call.1} parent=1 // pred_check_branch
      %402 = sbr.rel (0) target = $region25
    $region24: #{tpu_custom_call.1} parent=1 // pred_region
      %s404 = ssub.s32 32, 32
      %405 = vsyncadd [#allocation3], %s404
      %s407 = sshll.u32 [#allocation7], 4
      %s408 = int_to_ptr.vmem [resolvable:$true] %s407
      %410 = dma.vmem_to_hbm [thread:$0]  %s408, 32, %s3, [#allocation3]
    $region25: #{tpu_custom_call.1} parent=1 // pred_fallthru
      _
    // Predicated region
    $region26: #{tpu_custom_call.1} parent=1 // pred_check
      _
    $region27: #{tpu_custom_call.1} parent=1 // pred_check_branch
      %412 = sbr.rel (0) target = $region29
    $region28: #{tpu_custom_call.1} parent=1 // pred_region
      %413 = dma.done [#allocation3], 32
    $region29: #{tpu_custom_call.1} parent=1 // pred_fallthru
      _
    %414 = vsyncpa [#allocation3], 1
    %415 = vsyncpa [#allocation4], 1
    %416 = vsyncpa [#allocation5], 1

</llo_original>
